<compile_context>
chip_gen: v5e
topology: v5e:2x2
jax: 0.10.0
libtpu: 0.0.40
codegen_flags: <defaults>
</compile_context>

<pallas_src>
import jax
import jax.numpy as jnp
from jax.experimental import pallas as pl
from jax.experimental.pallas import tpu as pltpu

_LANES = 128
_FOLD = 8  # rows folded into each (8, 128) partial-sum block


def _sublane_multiple(dtype):
    """Row-alignment requirement for a [R, 128] slab of this dtype."""
    itemsize = jnp.dtype(dtype).itemsize
    return max(8, 32 // itemsize)  # 8 for f32, 16 for bf16, 32 for int8


def _double_and_partial_sum_kernel(x_ref, y_ref, psum_ref):
    # Load the tile once (single vld stream), double on the VPU, store.
    x = x_ref[...]                       # (TR, 128), input dtype
    y = x + x
    y_ref[...] = y
    # Fold the (TR, 128) tile into an (8, 128) f32 partial sum: layout-neutral
    # reshape + TR//8 VPU vreg adds — no XLU cross-lane reduce in the hot loop.
    tr = y.shape[0]
    psum_ref[...] = jnp.sum(
        y.astype(jnp.float32).reshape(tr // _FOLD, _FOLD, _LANES), axis=0)


def _pallas_double_and_sum(x2d, *, target_tile_bytes=4 * 1024 * 1024):
    """x2d: [R, 128], R a multiple of the dtype's sublane multiple.

    Returns (y2d, total) with y2d = 2*x2d (same dtype) and total = f32 sum.
    """
    R, L = x2d.shape
    dtype = x2d.dtype
    itemsize = jnp.dtype(dtype).itemsize
    sub = _sublane_multiple(dtype)
    assert L == _LANES and R % sub == 0

    # ~target_tile_bytes per buffer, rows a multiple of the sublane multiple.
    tile_rows = max(sub, (target_tile_bytes // (L * itemsize)) // sub * sub)

    if R <= tile_rows:
        # Small-input fast path: a single block covering the whole slab.
        tile_rows = R
        num_tiles = 1
        x_padded = x2d
    else:
        num_tiles = pl.cdiv(R, tile_rows)
        r_pad = num_tiles * tile_rows
        x_padded = x2d if r_pad == R else jnp.pad(x2d, ((0, r_pad - R), (0, 0)))

    rp = x_padded.shape[0]

    y2d, psum = pl.pallas_call(
        _double_and_partial_sum_kernel,
        out_shape=(
            jax.ShapeDtypeStruct((rp, L), dtype),
            jax.ShapeDtypeStruct((num_tiles * _FOLD, L), jnp.float32),
        ),
        grid=(num_tiles,),
        in_specs=[pl.BlockSpec((tile_rows, L), lambda i: (i, 0))],
        out_specs=(
            pl.BlockSpec((tile_rows, L), lambda i: (i, 0)),
            pl.BlockSpec((_FOLD, L), lambda i: (i, 0)),
        ),
        compiler_params=pltpu.CompilerParams(
            # Each grid step writes disjoint output blocks (its y tile + its
            # own psum block): genuinely parallel, shardable across the two
            # TensorCores on v7x.
            dimension_semantics=("parallel",),
            vmem_limit_bytes=48 * 1024 * 1024,
        ),
    )(x_padded)

    # Tiny final reduction (num_tiles*8 x 128 f32) done by XLA in the wrapper.
    total = jnp.sum(psum)
    return y2d[:R], total


def test_exception_pass_op(x):
    """JAX/Pallas equivalent of TestExceptionPassOp.forward. x: any shape."""
    orig_shape = x.shape
    dtype = x.dtype
    n = x.size
    sub = _sublane_multiple(dtype)
    chunk = sub * _LANES

    # Flatten and zero-pad to a lane-dense, sublane-aligned [R, 128] slab.
    n_pad = -(-n // chunk) * chunk
    x_flat = x.reshape(-1)
    if n_pad != n:
        x_flat = jnp.pad(x_flat, (0, n_pad - n))
    x2d = x_flat.reshape(n_pad // _LANES, _LANES)

    y2d, total = _pallas_double_and_sum(x2d)
    y = y2d.reshape(-1)[:n].reshape(orig_shape)

    # Host-side control flow mirroring PyTorch `if y.sum() < -1000: raise`.
    # Predicate is computed on device; only a single bool is read back, after
    # y has already been dispatched.
    exceeds = total < -1000.0
    if bool(exceeds):
        raise Exception("Sum should be greater than -1000")
    else:
        pass
    return y


if __name__ == "__main__":
    key = jax.random.PRNGKey(0)
    B, C, H, W = 2, 4, 16, 16
    x = jax.random.normal(key, (B, C, H, W), dtype=jnp.float32)

    y = test_exception_pass_op(x)
    y = jax.block_until_ready(y)

    # Sanity check against reference semantics (small-input fast path).
    ref = x + x
    assert y.shape == (B, C, H, W)
    assert jnp.allclose(y, ref, atol=1e-6), "mismatch vs reference y = x + x"

    # In-kernel partial-sum path agrees with a direct sum.
    _, total = _pallas_double_and_sum(
        x.reshape(x.size // _LANES, _LANES))
    assert jnp.allclose(total, jnp.sum(ref), rtol=1e-5, atol=1e-3), (
        "mismatch vs reference sum(y)")

    # Exercise the tiled + zero-padded path (ragged element count > one tile).
    x_big = jax.random.normal(jax.random.PRNGKey(1), (1, 3, 777, 999),
                              dtype=jnp.float32)
    y_big = jax.block_until_ready(test_exception_pass_op(x_big))
    assert y_big.shape == x_big.shape
    assert jnp.allclose(y_big, x_big + x_big, atol=1e-6), (
        "mismatch vs reference on tiled/padded path")

    print("KERNEL_OK")
</pallas_src>

<mosaic_0001>
module attributes {stable_mosaic.version = 11 : i64} {
  func.func @_double_and_partial_sum_kernel(%arg0: i32, %arg1: memref<16x128xf32, #tpu.memory_space<vmem>>, %arg2: memref<16x128xf32, #tpu.memory_space<vmem>>, %arg3: memref<8x128xf32, #tpu.memory_space<vmem>>) attributes {dimension_semantics = [#tpu.dimension_semantics<parallel>], iteration_bounds = array<i64: 1>, scalar_prefetch = 0 : i64, scratch_operands = 0 : i64, tpu.core_type = #tpu.core_type<tc>, window_params = [{transform_indices = @transform_0, window_bounds = array<i64: 16, 128>}, {transform_indices = @transform_1, window_bounds = array<i64: 16, 128>}, {transform_indices = @transform_2, window_bounds = array<i64: 8, 128>}]} {
    %c0 = arith.constant 0 : index
    %c0_0 = arith.constant 0 : index
    %0 = vector.load %arg1[%c0, %c0_0] : memref<16x128xf32, #tpu.memory_space<vmem>>, vector<16x128xf32>
    %1 = arith.addf %0, %0 : vector<16x128xf32>
    %c0_1 = arith.constant 0 : index
    %c0_2 = arith.constant 0 : index
    %2 = vector.load %arg2[%c0_1, %c0_2] : memref<16x128xf32, #tpu.memory_space<vmem>>, vector<16x128xf32>
    tpu.vector_store %arg2[%c0_1, %c0_2], %1 {strides = array<i32>} : memref<16x128xf32, #tpu.memory_space<vmem>>, vector<16x128xf32>,
    %3 = vector.shape_cast %1 : vector<16x128xf32> to vector<2x8x128xf32>
    %cst = arith.constant dense<0.000000e+00> : vector<8x128xf32>
    %4 = vector.multi_reduction <add>, %3, %cst [0] : vector<2x8x128xf32> to vector<8x128xf32>
    %c0_3 = arith.constant 0 : index
    %c0_4 = arith.constant 0 : index
    %5 = vector.load %arg3[%c0_3, %c0_4] : memref<8x128xf32, #tpu.memory_space<vmem>>, vector<8x128xf32>
    tpu.vector_store %arg3[%c0_3, %c0_4], %4 {strides = array<i32>} : memref<8x128xf32, #tpu.memory_space<vmem>>, vector<8x128xf32>,
    return
  }
  func.func @transform_0(%arg0: i32) -> (i32, i32) {
    %c0_i32 = arith.constant 0 : i32
    %c0_i32_0 = arith.constant 0 : i32
    return %arg0, %c0_i32 : i32, i32
  }
  func.func @transform_1(%arg0: i32) -> (i32, i32) {
    %c0_i32 = arith.constant 0 : i32
    %c0_i32_0 = arith.constant 0 : i32
    return %arg0, %c0_i32 : i32, i32
  }
  func.func @transform_2(%arg0: i32) -> (i32, i32) {
    %c0_i32 = arith.constant 0 : i32
    %c0_i32_0 = arith.constant 0 : i32
    return %arg0, %c0_i32 : i32, i32
  }
}

</mosaic_0001>

<llo_original>
// kernel: tpu_custom_call.1
$region0: #{tpu_custom_call.1}
  #allocation0 [shape = 'u32[]', space=smem, size = 0x4, offset = 0x4, fixed_abs, tag = 'smem constant byte address 0x4 - core index']
  #allocation1 [shape = 'u32[72,128]{1,0:T(1,128)}', space=vmem, size = 0x9000, scoped, tag = 'internal scratch']
  %s0 = inlined_call_operand.hbm [shape: f32[16,128], index: 0, kind: input, shape index: {}]
  %s1 = inlined_call_operand.hbm [shape: f32[16,128], index: 1, kind: output, shape index: {0}]
  %s2 = inlined_call_operand.hbm [shape: f32[8,128], index: 2, kind: output, shape index: {1}]
  %3 = xla_tuple %s1, %s2
  %s4 = sld [smem:[#allocation0]]
  $region26: #{tpu_custom_call.1} parent=0
    _
  %s6 = ssub.s32 1, %s4
  %s7 = scalar_select 0, %s6, %s4
  $region1: #{tpu_custom_call.1} parent=0
    #allocation2 [shape = 'u8[8192]{0}', space=vmem, size = 0x2000, scoped, tag = 'input window, operand 0, single buffered']
    #allocation3 [shape = 's32[1]{0}', space=sflag, size = 0x4, scoped, tag = 'scoped memory for tpu_custom_call.1']
    #allocation4 [shape = 's32[1]{0}', space=sflag, size = 0x4, scoped, tag = 'scoped memory for tpu_custom_call.1']
    #allocation5 [shape = 'u8[8192]{0}', space=vmem, size = 0x2000, scoped, tag = 'output window, operand 0, single buffered']
    #allocation6 [shape = 'u8[4096]{0}', space=vmem, size = 0x1000, scoped, tag = 'output window, operand 1, single buffered']
    #allocation7 [shape = 's32[1]{0}', space=sflag, size = 0x4, scoped, tag = 'scoped memory for tpu_custom_call.1']
    %8 = vsyncpa [#allocation3], 0
    %9 = vsyncpa [#allocation4], 0
    %10 = vsyncpa [#allocation7], 0
    // Predicated region
    $region2: #{tpu_custom_call.1} parent=1 // pred_check
      _
    $region3: #{tpu_custom_call.1} parent=1 // pred_check_branch
      %12 = sbr.rel (0) target = $region5
    $region4: #{tpu_custom_call.1} parent=1 // pred_region
      %14 = vsyncadd [#allocation3], 0
      %s15 = sshll.u32 %s0, 4
      %s16 = int_to_ptr.hbm [resolvable:$true] %s15
      %s17 = sshll.u32 [#allocation2], 4
      %s18 = int_to_ptr.vmem [resolvable:$true] %s17
      %23 = dma.hbm_to_vmem [thread:$0]  %s16, 256, %s18, [#allocation3], 128, 128, 8
    $region5: #{tpu_custom_call.1} parent=1 // pred_fallthru
      _
    // Predicated region
    $region6: #{tpu_custom_call.1} parent=1 // pred_check
      _
    $region7: #{tpu_custom_call.1} parent=1 // pred_check_branch
      %25 = sbr.rel (0) target = $region9
    $region8: #{tpu_custom_call.1} parent=1 // pred_region
      %27 = dma.done [#allocation3], 256
    $region9: #{tpu_custom_call.1} parent=1 // pred_fallthru
      _
    %v28 = vld [vmem:[#allocation2] sm:$0xff]
    %v29 = vld [vmem:[#allocation2 + $0x8] sm:$0xff]
    %v30 = vadd.f32 %v28, %v28
    %v31 = vadd.f32 %v29, %v29
    %32 = vst [vmem:[#allocation5] sm:$0xff] %v30
    %33 = vst [vmem:[#allocation5 + $0x8] sm:$0xff] %v31
    %v34 = vadd.f32 %v30, %v31
    %35 = vst [vmem:[#allocation6] sm:$0xff] %v34
    // Predicated region
    $region10: #{tpu_custom_call.1} parent=1 // pred_check
      _
    $region11: #{tpu_custom_call.1} parent=1 // pred_check_branch
      %37 = sbr.rel (0) target = $region13
    $region12: #{tpu_custom_call.1} parent=1 // pred_region
      %39 = vsyncadd [#allocation4], 0
      %s40 = sshll.u32 [#allocation5], 4
      %s41 = int_to_ptr.vmem [resolvable:$true] %s40
      %s42 = sshll.u32 %s1, 4
      %s43 = int_to_ptr.hbm [resolvable:$true] %s42
      %48 = dma.vmem_to_hbm [thread:$0]  %s41, 256, %s43, [#allocation4], 128, 128, 8
    $region13: #{tpu_custom_call.1} parent=1 // pred_fallthru
      _
    // Predicated region
    $region14: #{tpu_custom_call.1} parent=1 // pred_check
      _
    $region15: #{tpu_custom_call.1} parent=1 // pred_check_branch
      %50 = sbr.rel (0) target = $region17
    $region16: #{tpu_custom_call.1} parent=1 // pred_region
      %52 = vsyncadd [#allocation7], 0
      %s54 = sshll.u32 [#allocation6], 4
      %s55 = int_to_ptr.vmem [resolvable:$true] %s54
      %s56 = sshll.u32 %s2, 4
      %s57 = int_to_ptr.hbm [resolvable:$true] %s56
      %59 = dma.vmem_to_hbm [thread:$0]  %s55, 128, %s57, [#allocation7]
    $region17: #{tpu_custom_call.1} parent=1 // pred_fallthru
      _
    // Predicated region
    $region18: #{tpu_custom_call.1} parent=1 // pred_check
      _
    $region19: #{tpu_custom_call.1} parent=1 // pred_check_branch
      %61 = sbr.rel (0) target = $region21
    $region20: #{tpu_custom_call.1} parent=1 // pred_region
      %63 = dma.done [#allocation4], 256
    $region21: #{tpu_custom_call.1} parent=1 // pred_fallthru
      _
    // Predicated region
    $region22: #{tpu_custom_call.1} parent=1 // pred_check
      _
    $region23: #{tpu_custom_call.1} parent=1 // pred_check_branch
      %65 = sbr.rel (0) target = $region25
    $region24: #{tpu_custom_call.1} parent=1 // pred_region
      %67 = dma.done [#allocation7], 128
    $region25: #{tpu_custom_call.1} parent=1 // pred_fallthru
      _
    %68 = vsyncpa [#allocation3], 1
    %69 = vsyncpa [#allocation4], 1
    %70 = vsyncpa [#allocation7], 1

</llo_original>
